<compile_context>
chip_gen: v5e
topology: v5e:2x2
jax: 0.10.0
libtpu: 0.0.40
codegen_flags: <defaults>
</compile_context>

<pallas_src>
import functools

import jax
import jax.numpy as jnp
from jax.experimental import pallas as pl
from jax.experimental.pallas import tpu as pltpu


def _round_up(v, m):
    return (v + m - 1) // m * m


def _pad_to(a, shape):
    pads = [(0, t - s) for s, t in zip(a.shape, shape)]
    return jnp.pad(a, pads) if any(p[1] for p in pads) else a


def ff_kernel(x_ref, w1s_ref, b1s_ref, w2_ref, b2_ref, w3_ref, b3_ref, o_ref,
              *, hidden_pad):
    # One row-tile of x (bf16); all weights resident in VMEM (bf16), biases f32.
    x = x_ref[...]                                             # (tm, Kp) bf16

    # Fused first layer + shortcut: x @ [w1 | ws]  -> (tm, 2*Hp) f32 accum.
    y = jnp.dot(x, w1s_ref[...], preferred_element_type=jnp.float32) + b1s_ref[...]
    h = jnp.maximum(y[:, :hidden_pad], 0.0)                    # block branch
    s = y[:, hidden_pad:]                                      # shortcut branch

    h = jnp.dot(h.astype(jnp.bfloat16), w2_ref[...],
                preferred_element_type=jnp.float32) + b2_ref[...]
    h = jnp.maximum(h, 0.0)
    h = jnp.dot(h.astype(jnp.bfloat16), w3_ref[...],
                preferred_element_type=jnp.float32) + b3_ref[...]
    h = jnp.maximum(h, 0.0)

    o_ref[...] = (h + s).astype(o_ref.dtype)


def _make_ff_call(Np, Kp, Hp, tm, out_dtype, single_buffer_weights):
    wmode = pl.Buffered(1) if single_buffer_weights else None

    def w_spec(shape):
        if wmode is None:
            return pl.BlockSpec(shape, lambda i: (0, 0))
        return pl.BlockSpec(shape, lambda i: (0, 0), pipeline_mode=wmode)

    grid_spec = pltpu.PrefetchScalarGridSpec(
        num_scalar_prefetch=0,
        grid=(Np // tm,),
        in_specs=[
            pl.BlockSpec((tm, Kp), lambda i: (i, 0)),   # x row tile (bf16)
            w_spec((Kp, 2 * Hp)),                       # fused [w1 | ws] (bf16)
            w_spec((1, 2 * Hp)),                        # fused [b1 | bs] (f32)
            w_spec((Hp, Hp)),                           # w2 (bf16)
            w_spec((1, Hp)),                            # b2 (f32)
            w_spec((Hp, Hp)),                           # w3 (bf16)
            w_spec((1, Hp)),                            # b3 (f32)
        ],
        out_specs=pl.BlockSpec((tm, Hp), lambda i: (i, 0)),
    )

    # Explicit VMEM budget: double-buffered x/out tiles + (single-buffered)
    # resident weights + intermediate (tm, 2*Hp) f32 headroom.
    weight_bufs = 1 if single_buffer_weights else 2
    vmem_bytes = (
        2 * tm * Kp * 2                                   # x tiles, bf16
        + 2 * tm * Hp * 4                                 # out tiles, f32
        + weight_bufs * (Kp * 2 * Hp + 2 * Hp * Hp) * 2   # weights, bf16
        + weight_bufs * 4 * Hp * 4                        # biases, f32
        + 2 * tm * 2 * Hp * 4                             # intermediates
    )
    vmem_limit = int(min(60 * 1024 * 1024,
                         max(16 * 1024 * 1024, 2 * vmem_bytes)))

    kernel = functools.partial(ff_kernel, hidden_pad=Hp)
    return pl.pallas_call(
        kernel,
        out_shape=jax.ShapeDtypeStruct((Np, Hp), out_dtype),
        grid_spec=grid_spec,
        compiler_params=pltpu.CompilerParams(
            dimension_semantics=("parallel",),
            vmem_limit_bytes=vmem_limit),
    )


def ff_forward(x, params, *, tm=256):
    """x: (N, input_dim) float32. params: dict of transposed f32 weights/biases."""
    N, input_dim = x.shape
    hidden_dim = params["w1"].shape[1]

    # Lane-dense padding (multiples of 128) and row tile (multiple of 16).
    Kp = _round_up(input_dim, 128)
    Hp = _round_up(hidden_dim, 128)
    tm_eff = _round_up(min(tm, _round_up(N, 16)), 16)
    Np = _round_up(N, tm_eff)

    bf16 = jnp.bfloat16
    x_p = _pad_to(x, (Np, Kp)).astype(bf16)

    w1 = _pad_to(params["w1"], (Kp, Hp)).astype(bf16)
    ws = _pad_to(params["ws"], (Kp, Hp)).astype(bf16)
    w1s = jnp.concatenate([w1, ws], axis=1)                     # (Kp, 2*Hp)
    b1s = jnp.concatenate([_pad_to(params["b1"], (1, Hp)),
                           _pad_to(params["bs"], (1, Hp))],
                          axis=1).astype(jnp.float32)           # (1, 2*Hp)

    w2 = _pad_to(params["w2"], (Hp, Hp)).astype(bf16)
    w3 = _pad_to(params["w3"], (Hp, Hp)).astype(bf16)
    b2 = _pad_to(params["b2"], (1, Hp)).astype(jnp.float32)
    b3 = _pad_to(params["b3"], (1, Hp)).astype(jnp.float32)

    args = (x_p, w1s, b1s, w2, b2, w3, b3)
    # TODO(synk): for very large hidden_dim (resident bf16 weights >~20-30 MiB),
    # add a second "parallel" grid axis tiling Hp instead of keeping all
    # weights fully resident (v7x has only 64 MiB physical VMEM per TC).
    try:
        out_p = _make_ff_call(Np, Kp, Hp, tm_eff, x.dtype, True)(*args)
    except Exception:
        # Fallback if this JAX build rejects pipeline_mode=pl.Buffered(1).
        out_p = _make_ff_call(Np, Kp, Hp, tm_eff, x.dtype, False)(*args)

    return out_p[:N, :hidden_dim]


def init_params(key, input_dim, hidden_dim):
    """Deterministic synthetic init (PyTorch-style uniform fan-in bound).
    Weights stored already transposed to (in, out), f32."""
    ks = jax.random.split(key, 8)

    def linear(kw, kb, fan_in, fan_out):
        bound = 1.0 / jnp.sqrt(fan_in)
        w = jax.random.uniform(kw, (fan_in, fan_out), jnp.float32, -bound, bound)
        b = jax.random.uniform(kb, (1, fan_out), jnp.float32, -bound, bound)
        return w, b

    w1, b1 = linear(ks[0], ks[1], input_dim, hidden_dim)
    w2, b2 = linear(ks[2], ks[3], hidden_dim, hidden_dim)
    w3, b3 = linear(ks[4], ks[5], hidden_dim, hidden_dim)
    ws, bs = linear(ks[6], ks[7], input_dim, hidden_dim)
    return dict(w1=w1, b1=b1, w2=w2, b2=b2, w3=w3, b3=b3, ws=ws, bs=bs)


def ff_reference(x, p):
    """Reference matching the kernel's bf16-operand / f32-accumulate math."""
    bf16 = jnp.bfloat16
    dot = lambda a, w: jnp.dot(a.astype(bf16), w.astype(bf16),
                               preferred_element_type=jnp.float32)
    relu = lambda v: jnp.maximum(v, 0.0)
    h = relu(dot(x, p["w1"]) + p["b1"])
    h = relu(dot(h, p["w2"]) + p["b2"])
    h = relu(dot(h, p["w3"]) + p["b3"])
    return h + dot(x, p["ws"]) + p["bs"]


if __name__ == "__main__":
    key = jax.random.PRNGKey(0)

    # Case 1: the module's toy shapes (exercises the 128-padding path, grid=1).
    k_x, k_p = jax.random.split(key)
    N, input_dim, hidden_dim = 16, 32, 32
    x = jax.random.normal(k_x, (N, input_dim), jnp.float32)
    params = init_params(k_p, input_dim, hidden_dim)

    out = jax.block_until_ready(ff_forward(x, params))
    ref = ff_reference(x, params)
    assert out.shape == (N, hidden_dim)
    assert jnp.allclose(out, ref, atol=1e-2, rtol=1e-2), \
        float(jnp.max(jnp.abs(out - ref)))

    # Case 2: aligned shapes exercising the full tm=256 tile and grid > 1.
    k_x2, k_p2 = jax.random.split(jax.random.PRNGKey(1))
    N2, in2, hid2 = 512, 128, 256
    x2 = jax.random.normal(k_x2, (N2, in2), jnp.float32)
    params2 = init_params(k_p2, in2, hid2)

    out2 = jax.block_until_ready(ff_forward(x2, params2))
    ref2 = ff_reference(x2, params2)
    assert out2.shape == (N2, hid2)
    assert jnp.allclose(out2, ref2, atol=2e-2, rtol=2e-2), \
        float(jnp.max(jnp.abs(out2 - ref2)))

    print("KERNEL_OK")
</pallas_src>

<mosaic_0001>
module attributes {stable_mosaic.version = 11 : i64} {
  func.func @ff_kernel(%arg0: i32, %arg1: memref<16x128xbf16, #tpu.memory_space<vmem>>, %arg2: memref<128x256xbf16, #tpu.memory_space<vmem>>, %arg3: memref<1x256xf32, #tpu.memory_space<vmem>>, %arg4: memref<128x128xbf16, #tpu.memory_space<vmem>>, %arg5: memref<1x128xf32, #tpu.memory_space<vmem>>, %arg6: memref<128x128xbf16, #tpu.memory_space<vmem>>, %arg7: memref<1x128xf32, #tpu.memory_space<vmem>>, %arg8: memref<16x128xf32, #tpu.memory_space<vmem>>) attributes {dimension_semantics = [#tpu.dimension_semantics<parallel>], iteration_bounds = array<i64: 1>, scalar_prefetch = 0 : i64, scratch_operands = 0 : i64, tpu.core_type = #tpu.core_type<tc>, window_params = [{transform_indices = @transform_0, window_bounds = array<i64: 16, 128>}, {pipeline_mode = #tpu.pipeline_mode<synchronous>, transform_indices = @transform_1, window_bounds = array<i64: 128, 256>}, {pipeline_mode = #tpu.pipeline_mode<synchronous>, transform_indices = @transform_2, window_bounds = array<i64: 1, 256>}, {pipeline_mode = #tpu.pipeline_mode<synchronous>, transform_indices = @transform_3, window_bounds = array<i64: 128, 128>}, {pipeline_mode = #tpu.pipeline_mode<synchronous>, transform_indices = @transform_4, window_bounds = array<i64: 1, 128>}, {pipeline_mode = #tpu.pipeline_mode<synchronous>, transform_indices = @transform_5, window_bounds = array<i64: 128, 128>}, {pipeline_mode = #tpu.pipeline_mode<synchronous>, transform_indices = @transform_6, window_bounds = array<i64: 1, 128>}, {transform_indices = @transform_7, window_bounds = array<i64: 16, 128>}]} {
    %c0 = arith.constant 0 : index
    %c0_0 = arith.constant 0 : index
    %0 = vector.load %arg1[%c0, %c0_0] : memref<16x128xbf16, #tpu.memory_space<vmem>>, vector<16x128xbf16>
    %c0_1 = arith.constant 0 : index
    %c0_2 = arith.constant 0 : index
    %1 = vector.load %arg2[%c0_1, %c0_2] : memref<128x256xbf16, #tpu.memory_space<vmem>>, vector<128x256xbf16>
    %cst = arith.constant dense<0.000000e+00> : vector<16x256xf32>
    %2 = tpu.matmul %0, %1, %cst {dimension_numbers = #tpu.dot_dimension_numbers<[1], [0], [0], [1], [0, 0, 1, 1], [], []>} : vector<16x128xbf16>, vector<128x256xbf16>, vector<16x256xf32> -> vector<16x256xf32>
    %c0_3 = arith.constant 0 : index
    %c0_4 = arith.constant 0 : index
    %3 = vector.load %arg3[%c0_3, %c0_4] : memref<1x256xf32, #tpu.memory_space<vmem>>, vector<1x256xf32>
    %4 = vector.broadcast %3 : vector<1x256xf32> to vector<16x256xf32>
    %5 = arith.addf %2, %4 : vector<16x256xf32>
    %6 = vector.extract_strided_slice %5 {offsets = [0, 0], sizes = [16, 128], strides = [1, 1]} : vector<16x256xf32> to vector<16x128xf32>
    %cst_5 = arith.constant 0.000000e+00 : f32
    %7 = vector.broadcast %cst_5 : f32 to vector<16x128xf32>
    %8 = arith.maximumf %6, %7 : vector<16x128xf32>
    %9 = vector.extract_strided_slice %5 {offsets = [0, 128], sizes = [16, 128], strides = [1, 1]} : vector<16x256xf32> to vector<16x128xf32>
    %10 = arith.truncf %8 : vector<16x128xf32> to vector<16x128xbf16>
    %c0_6 = arith.constant 0 : index
    %c0_7 = arith.constant 0 : index
    %11 = vector.load %arg4[%c0_6, %c0_7] : memref<128x128xbf16, #tpu.memory_space<vmem>>, vector<128x128xbf16>
    %cst_8 = arith.constant dense<0.000000e+00> : vector<16x128xf32>
    %12 = tpu.matmul %10, %11, %cst_8 {dimension_numbers = #tpu.dot_dimension_numbers<[1], [0], [0], [1], [0, 0, 1, 1], [], []>} : vector<16x128xbf16>, vector<128x128xbf16>, vector<16x128xf32> -> vector<16x128xf32>
    %c0_9 = arith.constant 0 : index
    %c0_10 = arith.constant 0 : index
    %13 = vector.load %arg5[%c0_9, %c0_10] : memref<1x128xf32, #tpu.memory_space<vmem>>, vector<1x128xf32>
    %14 = vector.broadcast %13 : vector<1x128xf32> to vector<16x128xf32>
    %15 = arith.addf %12, %14 : vector<16x128xf32>
    %cst_11 = arith.constant 0.000000e+00 : f32
    %16 = vector.broadcast %cst_11 : f32 to vector<16x128xf32>
    %17 = arith.maximumf %15, %16 : vector<16x128xf32>
    %18 = arith.truncf %17 : vector<16x128xf32> to vector<16x128xbf16>
    %c0_12 = arith.constant 0 : index
    %c0_13 = arith.constant 0 : index
    %19 = vector.load %arg6[%c0_12, %c0_13] : memref<128x128xbf16, #tpu.memory_space<vmem>>, vector<128x128xbf16>
    %cst_14 = arith.constant dense<0.000000e+00> : vector<16x128xf32>
    %20 = tpu.matmul %18, %19, %cst_14 {dimension_numbers = #tpu.dot_dimension_numbers<[1], [0], [0], [1], [0, 0, 1, 1], [], []>} : vector<16x128xbf16>, vector<128x128xbf16>, vector<16x128xf32> -> vector<16x128xf32>
    %c0_15 = arith.constant 0 : index
    %c0_16 = arith.constant 0 : index
    %21 = vector.load %arg7[%c0_15, %c0_16] : memref<1x128xf32, #tpu.memory_space<vmem>>, vector<1x128xf32>
    %22 = vector.broadcast %21 : vector<1x128xf32> to vector<16x128xf32>
    %23 = arith.addf %20, %22 : vector<16x128xf32>
    %cst_17 = arith.constant 0.000000e+00 : f32
    %24 = vector.broadcast %cst_17 : f32 to vector<16x128xf32>
    %25 = arith.maximumf %23, %24 : vector<16x128xf32>
    %26 = arith.addf %25, %9 : vector<16x128xf32>
    %c0_18 = arith.constant 0 : index
    %c0_19 = arith.constant 0 : index
    %27 = vector.load %arg8[%c0_18, %c0_19] : memref<16x128xf32, #tpu.memory_space<vmem>>, vector<16x128xf32>
    tpu.vector_store %arg8[%c0_18, %c0_19], %26 {strides = array<i32>} : memref<16x128xf32, #tpu.memory_space<vmem>>, vector<16x128xf32>,
    return
  }
  func.func @transform_0(%arg0: i32) -> (i32, i32) {
    %c0_i32 = arith.constant 0 : i32
    %c0_i32_0 = arith.constant 0 : i32
    return %arg0, %c0_i32 : i32, i32
  }
  func.func @transform_1(%arg0: i32) -> (i32, i32) {
    %c0_i32 = arith.constant 0 : i32
    %c0_i32_0 = arith.constant 0 : i32
    %c0_i32_1 = arith.constant 0 : i32
    return %c0_i32, %c0_i32_0 : i32, i32
  }
  func.func @transform_2(%arg0: i32) -> (i32, i32) {
    %c0_i32 = arith.constant 0 : i32
    %c0_i32_0 = arith.constant 0 : i32
    %c0_i32_1 = arith.constant 0 : i32
    return %c0_i32, %c0_i32_0 : i32, i32
  }
  func.func @transform_3(%arg0: i32) -> (i32, i32) {
    %c0_i32 = arith.constant 0 : i32
    %c0_i32_0 = arith.constant 0 : i32
    %c0_i32_1 = arith.constant 0 : i32
    return %c0_i32, %c0_i32_0 : i32, i32
  }
  func.func @transform_4(%arg0: i32) -> (i32, i32) {
    %c0_i32 = arith.constant 0 : i32
    %c0_i32_0 = arith.constant 0 : i32
    %c0_i32_1 = arith.constant 0 : i32
    return %c0_i32, %c0_i32_0 : i32, i32
  }
  func.func @transform_5(%arg0: i32) -> (i32, i32) {
    %c0_i32 = arith.constant 0 : i32
    %c0_i32_0 = arith.constant 0 : i32
    %c0_i32_1 = arith.constant 0 : i32
    return %c0_i32, %c0_i32_0 : i32, i32
  }
  func.func @transform_6(%arg0: i32) -> (i32, i32) {
    %c0_i32 = arith.constant 0 : i32
    %c0_i32_0 = arith.constant 0 : i32
    %c0_i32_1 = arith.constant 0 : i32
    return %c0_i32, %c0_i32_0 : i32, i32
  }
  func.func @transform_7(%arg0: i32) -> (i32, i32) {
    %c0_i32 = arith.constant 0 : i32
    %c0_i32_0 = arith.constant 0 : i32
    return %arg0, %c0_i32 : i32, i32
  }
}

module attributes {stable_mosaic.version = 11 : i64} {
  func.func @ff_kernel(%arg0: i32, %arg1: memref<16x128xbf16, #tpu.memory_space<vmem>>, %arg2: memref<128x256xbf16, #tpu.memory_space<vmem>>, %arg3: memref<1x256xf32, #tpu.memory_space<vmem>>, %arg4: memref<128x128xbf16, #tpu.memory_space<vmem>>, %arg5: memref<1x128xf32, #tpu.memory_space<vmem>>, %arg6: memref<128x128xbf16, #tpu.memory_space<vmem>>, %arg7: memref<1x128xf32, #tpu.memory_space<vmem>>, %arg8: memref<16x128xf32, #tpu.memory_space<vmem>>) attributes {dimension_semantics = [#tpu.dimension_semantics<parallel>], iteration_bounds = array<i64: 1>, scalar_prefetch = 0 : i64, scratch_operands = 0 : i64, tpu.core_type = #tpu.core_type<tc>, window_params = [{transform_indices = @transform_0, window_bounds = array<i64: 16, 128>}, {pipeline_mode = #tpu.pipeline_mode<synchronous>, transform_indices = @transform_1, window_bounds = array<i64: 128, 256>}, {pipeline_mode = #tpu.pipeline_mode<synchronous>, transform_indices = @transform_2, window_bounds = array<i64: 1, 256>}, {pipeline_mode = #tpu.pipeline_mode<synchronous>, transform_indices = @transform_3, window_bounds = array<i64: 128, 128>}, {pipeline_mode = #tpu.pipeline_mode<synchronous>, transform_indices = @transform_4, window_bounds = array<i64: 1, 128>}, {pipeline_mode = #tpu.pipeline_mode<synchronous>, transform_indices = @transform_5, window_bounds = array<i64: 128, 128>}, {pipeline_mode = #tpu.pipeline_mode<synchronous>, transform_indices = @transform_6, window_bounds = array<i64: 1, 128>}, {transform_indices = @transform_7, window_bounds = array<i64: 16, 128>}]} {
    %c0 = arith.constant 0 : index
    %c0_0 = arith.constant 0 : index
    %0 = vector.load %arg1[%c0, %c0_0] : memref<16x128xbf16, #tpu.memory_space<vmem>>, vector<16x128xbf16>
    %c0_1 = arith.constant 0 : index
    %c0_2 = arith.constant 0 : index
    %1 = vector.load %arg2[%c0_1, %c0_2] : memref<128x256xbf16, #tpu.memory_space<vmem>>, vector<128x256xbf16>
    %cst = arith.constant dense<0.000000e+00> : vector<16x256xf32>
    %2 = tpu.matmul %0, %1, %cst {dimension_numbers = #tpu.dot_dimension_numbers<[1], [0], [0], [1], [0, 0, 1, 1], [], []>} : vector<16x128xbf16>, vector<128x256xbf16>, vector<16x256xf32> -> vector<16x256xf32>
    %c0_3 = arith.constant 0 : index
    %c0_4 = arith.constant 0 : index
    %3 = vector.load %arg3[%c0_3, %c0_4] : memref<1x256xf32, #tpu.memory_space<vmem>>, vector<1x256xf32>
    %4 = vector.broadcast %3 : vector<1x256xf32> to vector<16x256xf32>
    %5 = arith.addf %2, %4 : vector<16x256xf32>
    %6 = vector.extract_strided_slice %5 {offsets = [0, 0], sizes = [16, 128], strides = [1, 1]} : vector<16x256xf32> to vector<16x128xf32>
    %cst_5 = arith.constant 0.000000e+00 : f32
    %7 = vector.broadcast %cst_5 : f32 to vector<16x128xf32>
    %8 = arith.maximumf %6, %7 : vector<16x128xf32>
    %9 = vector.extract_strided_slice %5 {offsets = [0, 128], sizes = [16, 128], strides = [1, 1]} : vector<16x256xf32> to vector<16x128xf32>
    %10 = arith.truncf %8 : vector<16x128xf32> to vector<16x128xbf16>
    %c0_6 = arith.constant 0 : index
    %c0_7 = arith.constant 0 : index
    %11 = vector.load %arg4[%c0_6, %c0_7] : memref<128x128xbf16, #tpu.memory_space<vmem>>, vector<128x128xbf16>
    %cst_8 = arith.constant dense<0.000000e+00> : vector<16x128xf32>
    %12 = tpu.matmul %10, %11, %cst_8 {dimension_numbers = #tpu.dot_dimension_numbers<[1], [0], [0], [1], [0, 0, 1, 1], [], []>} : vector<16x128xbf16>, vector<128x128xbf16>, vector<16x128xf32> -> vector<16x128xf32>
    %c0_9 = arith.constant 0 : index
    %c0_10 = arith.constant 0 : index
    %13 = vector.load %arg5[%c0_9, %c0_10] : memref<1x128xf32, #tpu.memory_space<vmem>>, vector<1x128xf32>
    %14 = vector.broadcast %13 : vector<1x128xf32> to vector<16x128xf32>
    %15 = arith.addf %12, %14 : vector<16x128xf32>
    %cst_11 = arith.constant 0.000000e+00 : f32
    %16 = vector.broadcast %cst_11 : f32 to vector<16x128xf32>
    %17 = arith.maximumf %15, %16 : vector<16x128xf32>
    %18 = arith.truncf %17 : vector<16x128xf32> to vector<16x128xbf16>
    %c0_12 = arith.constant 0 : index
    %c0_13 = arith.constant 0 : index
    %19 = vector.load %arg6[%c0_12, %c0_13] : memref<128x128xbf16, #tpu.memory_space<vmem>>, vector<128x128xbf16>
    %cst_14 = arith.constant dense<0.000000e+00> : vector<16x128xf32>
    %20 = tpu.matmul %18, %19, %cst_14 {dimension_numbers = #tpu.dot_dimension_numbers<[1], [0], [0], [1], [0, 0, 1, 1], [], []>} : vector<16x128xbf16>, vector<128x128xbf16>, vector<16x128xf32> -> vector<16x128xf32>
    %c0_15 = arith.constant 0 : index
    %c0_16 = arith.constant 0 : index
    %21 = vector.load %arg7[%c0_15, %c0_16] : memref<1x128xf32, #tpu.memory_space<vmem>>, vector<1x128xf32>
    %22 = vector.broadcast %21 : vector<1x128xf32> to vector<16x128xf32>
    %23 = arith.addf %20, %22 : vector<16x128xf32>
    %cst_17 = arith.constant 0.000000e+00 : f32
    %24 = vector.broadcast %cst_17 : f32 to vector<16x128xf32>
    %25 = arith.maximumf %23, %24 : vector<16x128xf32>
    %26 = arith.addf %25, %9 : vector<16x128xf32>
    %c0_18 = arith.constant 0 : index
    %c0_19 = arith.constant 0 : index
    %27 = vector.load %arg8[%c0_18, %c0_19] : memref<16x128xf32, #tpu.memory_space<vmem>>, vector<16x128xf32>
    tpu.vector_store %arg8[%c0_18, %c0_19], %26 {strides = array<i32>} : memref<16x128xf32, #tpu.memory_space<vmem>>, vector<16x128xf32>,
    return
  }
  func.func @transform_0(%arg0: i32) -> (i32, i32) {
    %c0_i32 = arith.constant 0 : i32
    %c0_i32_0 = arith.constant 0 : i32
    return %arg0, %c0_i32 : i32, i32
  }
  func.func @transform_1(%arg0: i32) -> (i32, i32) {
    %c0_i32 = arith.constant 0 : i32
    %c0_i32_0 = arith.constant 0 : i32
    %c0_i32_1 = arith.constant 0 : i32
    return %c0_i32, %c0_i32_0 : i32, i32
  }
  func.func @transform_2(%arg0: i32) -> (i32, i32) {
    %c0_i32 = arith.constant 0 : i32
    %c0_i32_0 = arith.constant 0 : i32
    %c0_i32_1 = arith.constant 0 : i32
    return %c0_i32, %c0_i32_0 : i32, i32
  }
  func.func @transform_3(%arg0: i32) -> (i32, i32) {
    %c0_i32 = arith.constant 0 : i32
    %c0_i32_0 = arith.constant 0 : i32
    %c0_i32_1 = arith.constant 0 : i32
    return %c0_i32, %c0_i32_0 : i32, i32
  }
  func.func @transform_4(%arg0: i32) -> (i32, i32) {
    %c0_i32 = arith.constant 0 : i32
    %c0_i32_0 = arith.constant 0 : i32
    %c0_i32_1 = arith.constant 0 : i32
    return %c0_i32, %c0_i32_0 : i32, i32
  }
  func.func @transform_5(%arg0: i32) -> (i32, i32) {
    %c0_i32 = arith.constant 0 : i32
    %c0_i32_0 = arith.constant 0 : i32
    %c0_i32_1 = arith.constant 0 : i32
    return %c0_i32, %c0_i32_0 : i32, i32
  }
  func.func @transform_6(%arg0: i32) -> (i32, i32) {
    %c0_i32 = arith.constant 0 : i32
    %c0_i32_0 = arith.constant 0 : i32
    %c0_i32_1 = arith.constant 0 : i32
    return %c0_i32, %c0_i32_0 : i32, i32
  }
  func.func @transform_7(%arg0: i32) -> (i32, i32) {
    %c0_i32 = arith.constant 0 : i32
    %c0_i32_0 = arith.constant 0 : i32
    return %arg0, %c0_i32 : i32, i32
  }
}

</mosaic_0001>

<llo_original>
// kernel: tpu_custom_call.1
$region0: #{tpu_custom_call.1}
  #allocation0 [shape = 'u32[]', space=smem, size = 0x4, offset = 0x4, fixed_abs, tag = 'smem constant byte address 0x4 - core index']
  #allocation1 [shape = 'u32[72,128]{1,0:T(1,128)}', space=vmem, size = 0x9000, scoped, tag = 'internal scratch']
  %s0 = inlined_call_operand.hbm [shape: bf16[16,128], index: 0, kind: input, shape index: {}]
  %s1 = inlined_call_operand.hbm [shape: bf16[128,256], index: 1, kind: input, shape index: {}]
  %s2 = inlined_call_operand.hbm [shape: f32[1,256], index: 2, kind: input, shape index: {}]
  %s3 = inlined_call_operand.hbm [shape: bf16[128,128], index: 3, kind: input, shape index: {}]
  %s4 = inlined_call_operand.vmem [shape: f32[1,128], index: 4, kind: input, shape index: {}]
  %s5 = inlined_call_operand.hbm [shape: bf16[128,128], index: 5, kind: input, shape index: {}]
  %s6 = inlined_call_operand.vmem [shape: f32[1,128], index: 6, kind: input, shape index: {}]
  %s7 = inlined_call_operand.hbm [shape: f32[16,128], index: 7, kind: output, shape index: {}]
  %s8 = sld [smem:[#allocation0]]
  $region58: #{tpu_custom_call.1} parent=0
    _
  %s10 = ssub.s32 1, %s8
  %s11 = scalar_select 0, %s10, %s8
  $region1: #{tpu_custom_call.1} parent=0
    #allocation2 [shape = 'u8[4096]{0}', space=vmem, size = 0x1000, scoped, tag = 'input window, operand 0, single buffered']
    #allocation3 [shape = 's32[1]{0}', space=sflag, size = 0x4, scoped, tag = 'scoped memory for tpu_custom_call.1']
    #allocation4 [shape = 's32[1]{0}', space=sflag, size = 0x4, scoped, tag = 'scoped memory for tpu_custom_call.1']
    #allocation5 [shape = 'u8[65536]{0}', space=vmem, size = 0x10000, scoped, tag = 'input window, operand 1, single buffered']
    #allocation6 [shape = 's32[1]{0}', space=sflag, size = 0x4, scoped, tag = 'scoped memory for tpu_custom_call.1']
    #allocation7 [shape = 'u8[1024]{0}', space=vmem, size = 0x400, scoped, tag = 'input window, operand 2, single buffered']
    #allocation8 [shape = 'u8[32768]{0}', space=vmem, size = 0x8000, scoped, tag = 'input window, operand 3, single buffered']
    #allocation9 [shape = 's32[1]{0}', space=sflag, size = 0x4, scoped, tag = 'scoped memory for tpu_custom_call.1']
    #allocation10 [shape = 'u8[32768]{0}', space=vmem, size = 0x8000, scoped, tag = 'input window, operand 5, single buffered']
    #allocation11 [shape = 'u8[8192]{0}', space=vmem, size = 0x2000, scoped, tag = 'output window, operand 0, single buffered']
    %12 = vsyncpa [#allocation3], 0
    %13 = vsyncpa [#allocation6], 0
    %14 = vsyncpa [#allocation9], 0
    %15 = vsyncpa [#allocation4], 0
    // Predicated region
    $region2: #{tpu_custom_call.1} parent=1 // pred_check
      _
    $region3: #{tpu_custom_call.1} parent=1 // pred_check_branch
      %17 = sbr.rel (0) target = $region5
    $region4: #{tpu_custom_call.1} parent=1 // pred_region
      %19 = vsyncadd [#allocation3], 0
      %s20 = sshll.u32 %s0, 4
      %s21 = int_to_ptr.hbm [resolvable:$true] %s20
      %s22 = sshll.u32 [#allocation2], 4
      %s23 = int_to_ptr.vmem [resolvable:$true] %s22
      %28 = dma.hbm_to_vmem [thread:$0]  %s21, 128, %s23, [#allocation3], 64, 64, 4
    $region5: #{tpu_custom_call.1} parent=1 // pred_fallthru
      _
    // Predicated region
    $region6: #{tpu_custom_call.1} parent=1 // pred_check
      _
    $region7: #{tpu_custom_call.1} parent=1 // pred_check_branch
      %30 = sbr.rel (0) target = $region9
    $region8: #{tpu_custom_call.1} parent=1 // pred_region
      %32 = vsyncadd [#allocation6], 0
      %s33 = sshll.u32 %s1, 4
      %s34 = int_to_ptr.hbm [resolvable:$true] %s33
      %s35 = sshll.u32 [#allocation5], 4
      %s36 = int_to_ptr.vmem [resolvable:$true] %s35
      %41 = dma.hbm_to_vmem [thread:$0]  %s34, 2048, %s36, [#allocation6], 128, 128, 8
    $region9: #{tpu_custom_call.1} parent=1 // pred_fallthru
      _
    // Predicated region
    $region10: #{tpu_custom_call.1} parent=1 // pred_check
      _
    $region11: #{tpu_custom_call.1} parent=1 // pred_check_branch
      %43 = sbr.rel (0) target = $region13
    $region12: #{tpu_custom_call.1} parent=1 // pred_region
      %45 = vsyncadd [#allocation6], 0
      %s47 = sshll.u32 %s2, 4
      %s48 = int_to_ptr.hbm [resolvable:$true] %s47
      %s49 = sshll.u32 [#allocation7], 4
      %s50 = int_to_ptr.vmem [resolvable:$true] %s49
      %52 = dma.hbm_to_vmem [thread:$0]  %s48, 32, %s50, [#allocation6]
    $region13: #{tpu_custom_call.1} parent=1 // pred_fallthru
      _
    // Predicated region
    $region14: #{tpu_custom_call.1} parent=1 // pred_check
      _
    $region15: #{tpu_custom_call.1} parent=1 // pred_check_branch
      %54 = sbr.rel (0) target = $region17
    $region16: #{tpu_custom_call.1} parent=1 // pred_region
      %56 = vsyncadd [#allocation9], 0
      %s57 = sshll.u32 %s3, 4
      %s58 = int_to_ptr.hbm [resolvable:$true] %s57
      %s59 = sshll.u32 [#allocation8], 4
      %s60 = int_to_ptr.vmem [resolvable:$true] %s59
      %65 = dma.hbm_to_vmem [thread:$0]  %s58, 1024, %s60, [#allocation9], 64, 64, 4
    $region17: #{tpu_custom_call.1} parent=1 // pred_fallthru
      _
    // Predicated region
    $region18: #{tpu_custom_call.1} parent=1 // pred_check
      _
    $region19: #{tpu_custom_call.1} parent=1 // pred_check_branch
      %67 = sbr.rel (0) target = $region21
    $region20: #{tpu_custom_call.1} parent=1 // pred_region
      _
    $region21: #{tpu_custom_call.1} parent=1 // pred_fallthru
      _
    // Predicated region
    $region22: #{tpu_custom_call.1} parent=1 // pred_check
      _
    $region23: #{tpu_custom_call.1} parent=1 // pred_check_branch
      %69 = sbr.rel (0) target = $region25
    $region24: #{tpu_custom_call.1} parent=1 // pred_region
      %71 = vsyncadd [#allocation9], 0
      %s72 = sshll.u32 %s5, 4
      %s73 = int_to_ptr.hbm [resolvable:$true] %s72
      %s74 = sshll.u32 [#allocation10], 4
      %s75 = int_to_ptr.vmem [resolvable:$true] %s74
      %80 = dma.hbm_to_vmem [thread:$0]  %s73, 1024, %s75, [#allocation9], 64, 64, 4
    $region25: #{tpu_custom_call.1} parent=1 // pred_fallthru
      _
    // Predicated region
    $region26: #{tpu_custom_call.1} parent=1 // pred_check
      _
    $region27: #{tpu_custom_call.1} parent=1 // pred_check_branch
      %82 = sbr.rel (0) target = $region29
    $region28: #{tpu_custom_call.1} parent=1 // pred_region
      _
    $region29: #{tpu_custom_call.1} parent=1 // pred_fallthru
      _
    // Predicated region
    $region30: #{tpu_custom_call.1} parent=1 // pred_check
      _
    $region31: #{tpu_custom_call.1} parent=1 // pred_check_branch
      %84 = sbr.rel (0) target = $region33
    $region32: #{tpu_custom_call.1} parent=1 // pred_region
      %86 = dma.done [#allocation3], 128
    $region33: #{tpu_custom_call.1} parent=1 // pred_fallthru
      _
    // Predicated region
    $region34: #{tpu_custom_call.1} parent=1 // pred_check
      _
    $region35: #{tpu_custom_call.1} parent=1 // pred_check_branch
      %88 = sbr.rel (0) target = $region37
    $region36: #{tpu_custom_call.1} parent=1 // pred_region
      %90 = dma.done [#allocation6], 2048
    $region37: #{tpu_custom_call.1} parent=1 // pred_fallthru
      _
    // Predicated region
    $region38: #{tpu_custom_call.1} parent=1 // pred_check
      _
    $region39: #{tpu_custom_call.1} parent=1 // pred_check_branch
      %92 = sbr.rel (0) target = $region41
    $region40: #{tpu_custom_call.1} parent=1 // pred_region
      %94 = dma.done [#allocation6], 32
    $region41: #{tpu_custom_call.1} parent=1 // pred_fallthru
      _
    // Predicated region
    $region42: #{tpu_custom_call.1} parent=1 // pred_check
      _
    $region43: #{tpu_custom_call.1} parent=1 // pred_check_branch
      %96 = sbr.rel (0) target = $region45
    $region44: #{tpu_custom_call.1} parent=1 // pred_region
      %98 = dma.done [#allocation9], 1024
    $region45: #{tpu_custom_call.1} parent=1 // pred_fallthru
      _
    // Predicated region
    $region46: #{tpu_custom_call.1} parent=1 // pred_check
      _
    $region47: #{tpu_custom_call.1} parent=1 // pred_check_branch
      %100 = sbr.rel (0) target = $region49
    $region48: #{tpu_custom_call.1} parent=1 // pred_region
      %102 = dma.done [#allocation9], 1024
    $region49: #{tpu_custom_call.1} parent=1 // pred_fallthru
      _
    %v103 = vld [vmem:[#allocation2] sm:$0xf]
    %v104 = vld [vmem:[#allocation2 + $0x4] sm:$0xf]
    %v105 = vld [vmem:[#allocation5] sm:$0xff]
    %v106 = vld [vmem:[#allocation5 + $0x8] sm:$0xff]
    %v107 = vld [vmem:[#allocation5 + $0x10] sm:$0xff]
    %v108 = vld [vmem:[#allocation5 + $0x18] sm:$0xff]
    %v109 = vld [vmem:[#allocation5 + $0x20] sm:$0xff]
    %v110 = vld [vmem:[#allocation5 + $0x28] sm:$0xff]
    %v111 = vld [vmem:[#allocation5 + $0x30] sm:$0xff]
    %v112 = vld [vmem:[#allocation5 + $0x38] sm:$0xff]
    %v113 = vld [vmem:[#allocation5 + $0x40] sm:$0xff]
    %v114 = vld [vmem:[#allocation5 + $0x48] sm:$0xff]
    %v115 = vld [vmem:[#allocation5 + $0x50] sm:$0xff]
    %v116 = vld [vmem:[#allocation5 + $0x58] sm:$0xff]
    %v117 = vld [vmem:[#allocation5 + $0x60] sm:$0xff]
    %v118 = vld [vmem:[#allocation5 + $0x68] sm:$0xff]
    %v119 = vld [vmem:[#allocation5 + $0x70] sm:$0xff]
    %v120 = vld [vmem:[#allocation5 + $0x78] sm:$0xff]
    %v121 = vld [vmem:[#allocation7] sm:$0x3]
    %v123 = vperm.slane %v121, 0
    %v124 = vperm.slane %v121, 1
    %v129 = vunpack.c.l.b16 %v103
    %v130 = vunpack.c.l.b16 %v104
    %v131 = vpack.c.b16 %v130, %v129
    %v149 = vunpack.c.l.b16 %v105
    %v150 = vunpack.c.h.b16 %v105
    %v151 = vunpack.c.l.b16 %v106
    %v152 = vunpack.c.h.b16 %v106
    %v153 = vunpack.c.l.b16 %v107
    %v154 = vunpack.c.h.b16 %v107
    %v155 = vunpack.c.l.b16 %v108
    %v156 = vunpack.c.h.b16 %v108
    %v157 = vunpack.c.l.b16 %v109
    %v158 = vunpack.c.h.b16 %v109
    %v159 = vunpack.c.l.b16 %v110
    %v160 = vunpack.c.h.b16 %v110
    %v161 = vunpack.c.l.b16 %v111
    %v162 = vunpack.c.h.b16 %v111
    %v163 = vunpack.c.l.b16 %v112
    %v164 = vunpack.c.h.b16 %v112
    %v165 = vunpack.c.l.b16 %v113
    %v166 = vunpack.c.h.b16 %v113
    %v167 = vunpack.c.l.b16 %v114
    %v168 = vunpack.c.h.b16 %v114
    %v169 = vunpack.c.l.b16 %v115
    %v170 = vunpack.c.h.b16 %v115
    %v171 = vunpack.c.l.b16 %v116
    %v172 = vunpack.c.h.b16 %v116
    %v173 = vunpack.c.l.b16 %v117
    %v174 = vunpack.c.h.b16 %v117
    %v175 = vunpack.c.l.b16 %v118
    %v176 = vunpack.c.h.b16 %v118
    %v177 = vunpack.c.l.b16 %v119
    %v178 = vunpack.c.h.b16 %v119
    %v179 = vunpack.c.l.b16 %v120
    %v180 = vunpack.c.h.b16 %v120
    %v181 = vpack.c.b16 %v151, %v149
    %v182 = vpack.c.b16 %v152, %v150
    %v183 = vpack.c.b16 %v155, %v153
    %v184 = vpack.c.b16 %v156, %v154
    %v185 = vpack.c.b16 %v159, %v157
    %v186 = vpack.c.b16 %v160, %v158
    %v187 = vpack.c.b16 %v163, %v161
    %v188 = vpack.c.b16 %v164, %v162
    %v189 = vpack.c.b16 %v167, %v165
    %v190 = vpack.c.b16 %v168, %v166
    %v191 = vpack.c.b16 %v171, %v169
    %v192 = vpack.c.b16 %v172, %v170
    %v193 = vpack.c.b16 %v175, %v173
    %v194 = vpack.c.b16 %v176, %v174
    %v195 = vpack.c.b16 %v179, %v177
    %v196 = vpack.c.b16 %v180, %v178
    %213 = vmatpush.bf16.msra.mxu0 %v195
    %214 = vmatpush.bf16.msra.mxu0 %v193
    %215 = vmatpush.bf16.msra.mxu0 %v191
    %216 = vmatpush.bf16.msra.mxu0 %v189
    %217 = vmatpush.bf16.msra.mxu0 %v187
    %218 = vmatpush.bf16.msra.mxu0 %v185
    %219 = vmatpush.bf16.msra.mxu0 %v183
    %220 = vmatpush.bf16.msra.mxu0 %v181
    %221 = vmatmul.bf16.gmra.mxu0 %v131
    %v222 = vpop.f32.mrf.mxu0
    %v223 = vadd.f32 %v123, %v222
    %v224 = vpop.f32.mrf.mxu0
    %v225 = vadd.f32 %v123, %v224
    %226 = vdwg.mxu0
    %227 = vmatpush.bf16.msra.mxu0 %v196
    %228 = vmatpush.bf16.msra.mxu0 %v194
    %229 = vmatpush.bf16.msra.mxu0 %v192
    %230 = vmatpush.bf16.msra.mxu0 %v190
    %231 = vmatpush.bf16.msra.mxu0 %v188
    %232 = vmatpush.bf16.msra.mxu0 %v186
    %233 = vmatpush.bf16.msra.mxu0 %v184
    %234 = vmatpush.bf16.msra.mxu0 %v182
    %235 = vmatmul.bf16.gmra.mxu0 %v131
    %v236 = vpop.f32.mrf.mxu0
    %v237 = vadd.f32 %v124, %v236
    %v238 = vpop.f32.mrf.mxu0
    %v239 = vadd.f32 %v124, %v238
    %240 = vdwg.mxu0
    %v241 = vmax.f32 %v223, 0.0
    %v242 = vmax.f32 %v225, 0.0
    %v243 = vpack.c.bf16 %v242, %v241
    %v244 = vld [vmem:[#allocation8] sm:$0xf]
    %v245 = vld [vmem:[#allocation8 + $0x4] sm:$0xf]
    %v246 = vld [vmem:[#allocation8 + $0x8] sm:$0xf]
    %v247 = vld [vmem:[#allocation8 + $0xc] sm:$0xf]
    %v248 = vld [vmem:[#allocation8 + $0x10] sm:$0xf]
    %v249 = vld [vmem:[#allocation8 + $0x14] sm:$0xf]
    %v250 = vld [vmem:[#allocation8 + $0x18] sm:$0xf]
    %v251 = vld [vmem:[#allocation8 + $0x1c] sm:$0xf]
    %v252 = vld [vmem:[#allocation8 + $0x20] sm:$0xf]
    %v253 = vld [vmem:[#allocation8 + $0x24] sm:$0xf]
    %v254 = vld [vmem:[#allocation8 + $0x28] sm:$0xf]
    %v255 = vld [vmem:[#allocation8 + $0x2c] sm:$0xf]
    %v256 = vld [vmem:[#allocation8 + $0x30] sm:$0xf]
    %v257 = vld [vmem:[#allocation8 + $0x34] sm:$0xf]
    %v258 = vld [vmem:[#allocation8 + $0x38] sm:$0xf]
    %v259 = vld [vmem:[#allocation8 + $0x3c] sm:$0xf]
    %v260 = vld [vmem:[%s4] sm:$0x1]
    %v262 = vperm.slane %v260, 0
    %v280 = vunpack.c.l.b16 %v244
    %v281 = vunpack.c.l.b16 %v245
    %v282 = vunpack.c.l.b16 %v246
    %v283 = vunpack.c.l.b16 %v247
    %v284 = vunpack.c.l.b16 %v248
    %v285 = vunpack.c.l.b16 %v249
    %v286 = vunpack.c.l.b16 %v250
    %v287 = vunpack.c.l.b16 %v251
    %v288 = vunpack.c.l.b16 %v252
    %v289 = vunpack.c.l.b16 %v253
    %v290 = vunpack.c.l.b16 %v254
    %v291 = vunpack.c.l.b16 %v255
    %v292 = vunpack.c.l.b16 %v256
    %v293 = vunpack.c.l.b16 %v257
    %v294 = vunpack.c.l.b16 %v258
    %v295 = vunpack.c.l.b16 %v259
    %v296 = vpack.c.b16 %v281, %v280
    %v297 = vpack.c.b16 %v283, %v282
    %v298 = vpack.c.b16 %v285, %v284
    %v299 = vpack.c.b16 %v287, %v286
    %v300 = vpack.c.b16 %v289, %v288
    %v301 = vpack.c.b16 %v291, %v290
    %v302 = vpack.c.b16 %v293, %v292
    %v303 = vpack.c.b16 %v295, %v294
    %312 = vmatpush.bf16.msra.mxu0 %v303
    %313 = vmatpush.bf16.msra.mxu0 %v302
    %314 = vmatpush.bf16.msra.mxu0 %v301
    %315 = vmatpush.bf16.msra.mxu0 %v300
    %316 = vmatpush.bf16.msra.mxu0 %v299
    %317 = vmatpush.bf16.msra.mxu0 %v298
    %318 = vmatpush.bf16.msra.mxu0 %v297
    %319 = vmatpush.bf16.msra.mxu0 %v296
    %320 = vmatmul.bf16.gmra.mxu0 %v243
    %v321 = vpop.f32.mrf.mxu0
    %v322 = vadd.f32 %v262, %v321
    %v323 = vpop.f32.mrf.mxu0
    %v324 = vadd.f32 %v262, %v323
    %325 = vdwg.mxu0
    %v326 = vmax.f32 %v322, 0.0
    %v327 = vmax.f32 %v324, 0.0
    %v328 = vpack.c.bf16 %v327, %v326
    %v329 = vld [vmem:[#allocation10] sm:$0xf]
    %v330 = vld [vmem:[#allocation10 + $0x4] sm:$0xf]
    %v331 = vld [vmem:[#allocation10 + $0x8] sm:$0xf]
    %v332 = vld [vmem:[#allocation10 + $0xc] sm:$0xf]
    %v333 = vld [vmem:[#allocation10 + $0x10] sm:$0xf]
    %v334 = vld [vmem:[#allocation10 + $0x14] sm:$0xf]
    %v335 = vld [vmem:[#allocation10 + $0x18] sm:$0xf]
    %v336 = vld [vmem:[#allocation10 + $0x1c] sm:$0xf]
    %v337 = vld [vmem:[#allocation10 + $0x20] sm:$0xf]
    %v338 = vld [vmem:[#allocation10 + $0x24] sm:$0xf]
    %v339 = vld [vmem:[#allocation10 + $0x28] sm:$0xf]
    %v340 = vld [vmem:[#allocation10 + $0x2c] sm:$0xf]
    %v341 = vld [vmem:[#allocation10 + $0x30] sm:$0xf]
    %v342 = vld [vmem:[#allocation10 + $0x34] sm:$0xf]
    %v343 = vld [vmem:[#allocation10 + $0x38] sm:$0xf]
    %v344 = vld [vmem:[#allocation10 + $0x3c] sm:$0xf]
    %v345 = vld [vmem:[%s6] sm:$0x1]
    %v347 = vperm.slane %v345, 0
    %v365 = vunpack.c.l.b16 %v329
    %v366 = vunpack.c.l.b16 %v330
    %v367 = vunpack.c.l.b16 %v331
    %v368 = vunpack.c.l.b16 %v332
    %v369 = vunpack.c.l.b16 %v333
    %v370 = vunpack.c.l.b16 %v334
    %v371 = vunpack.c.l.b16 %v335
    %v372 = vunpack.c.l.b16 %v336
    %v373 = vunpack.c.l.b16 %v337
    %v374 = vunpack.c.l.b16 %v338
    %v375 = vunpack.c.l.b16 %v339
    %v376 = vunpack.c.l.b16 %v340
    %v377 = vunpack.c.l.b16 %v341
    %v378 = vunpack.c.l.b16 %v342
    %v379 = vunpack.c.l.b16 %v343
    %v380 = vunpack.c.l.b16 %v344
    %v381 = vpack.c.b16 %v366, %v365
    %v382 = vpack.c.b16 %v368, %v367
    %v383 = vpack.c.b16 %v370, %v369
    %v384 = vpack.c.b16 %v372, %v371
    %v385 = vpack.c.b16 %v374, %v373
    %v386 = vpack.c.b16 %v376, %v375
    %v387 = vpack.c.b16 %v378, %v377
    %v388 = vpack.c.b16 %v380, %v379
    %397 = vmatpush.bf16.msra.mxu0 %v388
    %398 = vmatpush.bf16.msra.mxu0 %v387
    %399 = vmatpush.bf16.msra.mxu0 %v386
    %400 = vmatpush.bf16.msra.mxu0 %v385
    %401 = vmatpush.bf16.msra.mxu0 %v384
    %402 = vmatpush.bf16.msra.mxu0 %v383
    %403 = vmatpush.bf16.msra.mxu0 %v382
    %404 = vmatpush.bf16.msra.mxu0 %v381
    %405 = vmatmul.bf16.gmra.mxu0 %v328
    %v406 = vpop.f32.mrf.mxu0
    %v407 = vadd.f32 %v347, %v406
    %v408 = vpop.f32.mrf.mxu0
    %v409 = vadd.f32 %v347, %v408
    %410 = vdwg.mxu0
    %v411 = vmax.f32 %v407, 0.0
    %v412 = vmax.f32 %v409, 0.0
    %v413 = vadd.f32 %v411, %v237
    %v414 = vadd.f32 %v412, %v239
    %415 = vst [vmem:[#allocation11] sm:$0xff] %v413
    %416 = vst [vmem:[#allocation11 + $0x8] sm:$0xff] %v414
    // Predicated region
    $region50: #{tpu_custom_call.1} parent=1 // pred_check
      _
    $region51: #{tpu_custom_call.1} parent=1 // pred_check_branch
      %418 = sbr.rel (0) target = $region53
    $region52: #{tpu_custom_call.1} parent=1 // pred_region
      %420 = vsyncadd [#allocation4], 0
      %s421 = sshll.u32 [#allocation11], 4
      %s422 = int_to_ptr.vmem [resolvable:$true] %s421
      %s423 = sshll.u32 %s7, 4
      %s424 = int_to_ptr.hbm [resolvable:$true] %s423
      %429 = dma.vmem_to_hbm [thread:$0]  %s422, 256, %s424, [#allocation4], 128, 128, 8
    $region53: #{tpu_custom_call.1} parent=1 // pred_fallthru
      _
    // Predicated region
    $region54: #{tpu_custom_call.1} parent=1 // pred_check
      _
    $region55: #{tpu_custom_call.1} parent=1 // pred_check_branch
      %431 = sbr.rel (0) target = $region57
    $region56: #{tpu_custom_call.1} parent=1 // pred_region
      %433 = dma.done [#allocation4], 256
    $region57: #{tpu_custom_call.1} parent=1 // pred_fallthru
      _
    %434 = vsyncpa [#allocation3], 1
    %435 = vsyncpa [#allocation6], 1
    %436 = vsyncpa [#allocation9], 1
    %437 = vsyncpa [#allocation4], 1

// kernel: tpu_custom_call.1
$region0: #{tpu_custom_call.1}
  #allocation0 [shape = 'u32[]', space=smem, size = 0x4, offset = 0x4, fixed_abs, tag = 'smem constant byte address 0x4 - core index']
  #allocation1 [shape = 'u32[72,128]{1,0:T(1,128)}', space=vmem, size = 0x9000, scoped, tag = 'internal scratch']
  %s0 = inlined_call_operand.hbm [shape: bf16[16,128], index: 0, kind: input, shape index: {}]
  %s1 = inlined_call_operand.hbm [shape: bf16[128,256], index: 1, kind: input, shape index: {}]
  %s2 = inlined_call_operand.hbm [shape: f32[1,256], index: 2, kind: input, shape index: {}]
  %s3 = inlined_call_operand.hbm [shape: bf16[128,128], index: 3, kind: input, shape index: {}]
  %s4 = inlined_call_operand.vmem [shape: f32[1,128], index: 4, kind: input, shape index: {}]
  %s5 = inlined_call_operand.hbm [shape: bf16[128,128], index: 5, kind: input, shape index: {}]
  %s6 = inlined_call_operand.vmem [shape: f32[1,128], index: 6, kind: input, shape index: {}]
  %s7 = inlined_call_operand.hbm [shape: f32[16,128], index: 7, kind: output, shape index: {}]
  %s8 = sld [smem:[#allocation0]]
  $region58: #{tpu_custom_call.1} parent=0
    _
  %s10 = ssub.s32 1, %s8
  %s11 = scalar_select 0, %s10, %s8
  $region1: #{tpu_custom_call.1} parent=0
    #allocation2 [shape = 'u8[4096]{0}', space=vmem, size = 0x1000, scoped, tag = 'input window, operand 0, single buffered']
    #allocation3 [shape = 's32[1]{0}', space=sflag, size = 0x4, scoped, tag = 'scoped memory for tpu_custom_call.1']
    #allocation4 [shape = 's32[1]{0}', space=sflag, size = 0x4, scoped, tag = 'scoped memory for tpu_custom_call.1']
    #allocation5 [shape = 'u8[65536]{0}', space=vmem, size = 0x10000, scoped, tag = 'input window, operand 1, single buffered']
    #allocation6 [shape = 's32[1]{0}', space=sflag, size = 0x4, scoped, tag = 'scoped memory for tpu_custom_call.1']
    #allocation7 [shape = 'u8[1024]{0}', space=vmem, size = 0x400, scoped, tag = 'input window, operand 2, single buffered']
    #allocation8 [shape = 'u8[32768]{0}', space=vmem, size = 0x8000, scoped, tag = 'input window, operand 3, single buffered']
    #allocation9 [shape = 's32[1]{0}', space=sflag, size = 0x4, scoped, tag = 'scoped memory for tpu_custom_call.1']
    #allocation10 [shape = 'u8[32768]{0}', space=vmem, size = 0x8000, scoped, tag = 'input window, operand 5, single buffered']
    #allocation11 [shape = 'u8[8192]{0}', space=vmem, size = 0x2000, scoped, tag = 'output window, operand 0, single buffered']
    %12 = vsyncpa [#allocation3], 0
    %13 = vsyncpa [#allocation6], 0
    %14 = vsyncpa [#allocation9], 0
    %15 = vsyncpa [#allocation4], 0
    // Predicated region
    $region2: #{tpu_custom_call.1} parent=1 // pred_check
      _
    $region3: #{tpu_custom_call.1} parent=1 // pred_check_branch
      %17 = sbr.rel (0) target = $region5
    $region4: #{tpu_custom_call.1} parent=1 // pred_region
      %19 = vsyncadd [#allocation3], 0
      %s20 = sshll.u32 %s0, 4
      %s21 = int_to_ptr.hbm [resolvable:$true] %s20
      %s22 = sshll.u32 [#allocation2], 4
      %s23 = int_to_ptr.vmem [resolvable:$true] %s22
      %28 = dma.hbm_to_vmem [thread:$0]  %s21, 128, %s23, [#allocation3], 64, 64, 4
    $region5: #{tpu_custom_call.1} parent=1 // pred_fallthru
      _
    // Predicated region
    $region6: #{tpu_custom_call.1} parent=1 // pred_check
      _
    $region7: #{tpu_custom_call.1} parent=1 // pred_check_branch
      %30 = sbr.rel (0) target = $region9
    $region8: #{tpu_custom_call.1} parent=1 // pred_region
      %32 = vsyncadd [#allocation6], 0
      %s33 = sshll.u32 %s1, 4
      %s34 = int_to_ptr.hbm [resolvable:$true] %s33
      %s35 = sshll.u32 [#allocation5], 4
      %s36 = int_to_ptr.vmem [resolvable:$true] %s35
      %41 = dma.hbm_to_vmem [thread:$0]  %s34, 2048, %s36, [#allocation6], 128, 128, 8
    $region9: #{tpu_custom_call.1} parent=1 // pred_fallthru
      _
    // Predicated region
    $region10: #{tpu_custom_call.1} parent=1 // pred_check
      _
    $region11: #{tpu_custom_call.1} parent=1 // pred_check_branch
      %43 = sbr.rel (0) target = $region13
    $region12: #{tpu_custom_call.1} parent=1 // pred_region
      %45 = vsyncadd [#allocation6], 0
      %s47 = sshll.u32 %s2, 4
      %s48 = int_to_ptr.hbm [resolvable:$true] %s47
      %s49 = sshll.u32 [#allocation7], 4
      %s50 = int_to_ptr.vmem [resolvable:$true] %s49
      %52 = dma.hbm_to_vmem [thread:$0]  %s48, 32, %s50, [#allocation6]
    $region13: #{tpu_custom_call.1} parent=1 // pred_fallthru
      _
    // Predicated region
    $region14: #{tpu_custom_call.1} parent=1 // pred_check
      _
    $region15: #{tpu_custom_call.1} parent=1 // pred_check_branch
      %54 = sbr.rel (0) target = $region17
    $region16: #{tpu_custom_call.1} parent=1 // pred_region
      %56 = vsyncadd [#allocation9], 0
      %s57 = sshll.u32 %s3, 4
      %s58 = int_to_ptr.hbm [resolvable:$true] %s57
      %s59 = sshll.u32 [#allocation8], 4
      %s60 = int_to_ptr.vmem [resolvable:$true] %s59
      %65 = dma.hbm_to_vmem [thread:$0]  %s58, 1024, %s60, [#allocation9], 64, 64, 4
    $region17: #{tpu_custom_call.1} parent=1 // pred_fallthru
      _
    // Predicated region
    $region18: #{tpu_custom_call.1} parent=1 // pred_check
      _
    $region19: #{tpu_custom_call.1} parent=1 // pred_check_branch
      %67 = sbr.rel (0) target = $region21
    $region20: #{tpu_custom_call.1} parent=1 // pred_region
      _
    $region21: #{tpu_custom_call.1} parent=1 // pred_fallthru
      _
    // Predicated region
    $region22: #{tpu_custom_call.1} parent=1 // pred_check
      _
    $region23: #{tpu_custom_call.1} parent=1 // pred_check_branch
      %69 = sbr.rel (0) target = $region25
    $region24: #{tpu_custom_call.1} parent=1 // pred_region
      %71 = vsyncadd [#allocation9], 0
      %s72 = sshll.u32 %s5, 4
      %s73 = int_to_ptr.hbm [resolvable:$true] %s72
      %s74 = sshll.u32 [#allocation10], 4
      %s75 = int_to_ptr.vmem [resolvable:$true] %s74
      %80 = dma.hbm_to_vmem [thread:$0]  %s73, 1024, %s75, [#allocation9], 64, 64, 4
    $region25: #{tpu_custom_call.1} parent=1 // pred_fallthru
      _
    // Predicated region
    $region26: #{tpu_custom_call.1} parent=1 // pred_check
      _
    $region27: #{tpu_custom_call.1} parent=1 // pred_check_branch
      %82 = sbr.rel (0) target = $region29
    $region28: #{tpu_custom_call.1} parent=1 // pred_region
      _
    $region29: #{tpu_custom_call.1} parent=1 // pred_fallthru
      _
    // Predicated region
    $region30: #{tpu_custom_call.1} parent=1 // pred_check
      _
    $region31: #{tpu_custom_call.1} parent=1 // pred_check_branch
      %84 = sbr.rel (0) target = $region33
    $region32: #{tpu_custom_call.1} parent=1 // pred_region
      %86 = dma.done [#allocation3], 128
    $region33: #{tpu_custom_call.1} parent=1 // pred_fallthru
      _
    // Predicated region
    $region34: #{tpu_custom_call.1} parent=1 // pred_check
      _
    $region35: #{tpu_custom_call.1} parent=1 // pred_check_branch
      %88 = sbr.rel (0) target = $region37
    $region36: #{tpu_custom_call.1} parent=1 // pred_region
      %90 = dma.done [#allocation6], 2048
    $region37: #{tpu_custom_call.1} parent=1 // pred_fallthru
      _
    // Predicated region
    $region38: #{tpu_custom_call.1} parent=1 // pred_check
      _
    $region39: #{tpu_custom_call.1} parent=1 // pred_check_branch
      %92 = sbr.rel (0) target = $region41
    $region40: #{tpu_custom_call.1} parent=1 // pred_region
      %94 = dma.done [#allocation6], 32
    $region41: #{tpu_custom_call.1} parent=1 // pred_fallthru
      _
    // Predicated region
    $region42: #{tpu_custom_call.1} parent=1 // pred_check
      _
    $region43: #{tpu_custom_call.1} parent=1 // pred_check_branch
      %96 = sbr.rel (0) target = $region45
    $region44: #{tpu_custom_call.1} parent=1 // pred_region
      %98 = dma.done [#allocation9], 1024
    $region45: #{tpu_custom_call.1} parent=1 // pred_fallthru
      _
    // Predicated region
    $region46: #{tpu_custom_call.1} parent=1 // pred_check
      _
    $region47: #{tpu_custom_call.1} parent=1 // pred_check_branch
      %100 = sbr.rel (0) target = $region49
    $region48: #{tpu_custom_call.1} parent=1 // pred_region
      %102 = dma.done [#allocation9], 1024
    $region49: #{tpu_custom_call.1} parent=1 // pred_fallthru
      _
    %v103 = vld [vmem:[#allocation2] sm:$0xf]
    %v104 = vld [vmem:[#allocation2 + $0x4] sm:$0xf]
    %v105 = vld [vmem:[#allocation5] sm:$0xff]
    %v106 = vld [vmem:[#allocation5 + $0x8] sm:$0xff]
    %v107 = vld [vmem:[#allocation5 + $0x10] sm:$0xff]
    %v108 = vld [vmem:[#allocation5 + $0x18] sm:$0xff]
    %v109 = vld [vmem:[#allocation5 + $0x20] sm:$0xff]
    %v110 = vld [vmem:[#allocation5 + $0x28] sm:$0xff]
    %v111 = vld [vmem:[#allocation5 + $0x30] sm:$0xff]
    %v112 = vld [vmem:[#allocation5 + $0x38] sm:$0xff]
    %v113 = vld [vmem:[#allocation5 + $0x40] sm:$0xff]
    %v114 = vld [vmem:[#allocation5 + $0x48] sm:$0xff]
    %v115 = vld [vmem:[#allocation5 + $0x50] sm:$0xff]
    %v116 = vld [vmem:[#allocation5 + $0x58] sm:$0xff]
    %v117 = vld [vmem:[#allocation5 + $0x60] sm:$0xff]
    %v118 = vld [vmem:[#allocation5 + $0x68] sm:$0xff]
    %v119 = vld [vmem:[#allocation5 + $0x70] sm:$0xff]
    %v120 = vld [vmem:[#allocation5 + $0x78] sm:$0xff]
    %v121 = vld [vmem:[#allocation7] sm:$0x3]
    %v123 = vperm.slane %v121, 0
    %v124 = vperm.slane %v121, 1
    %v129 = vunpack.c.l.b16 %v103
    %v130 = vunpack.c.l.b16 %v104
    %v131 = vpack.c.b16 %v130, %v129
    %v149 = vunpack.c.l.b16 %v105
    %v150 = vunpack.c.h.b16 %v105
    %v151 = vunpack.c.l.b16 %v106
    %v152 = vunpack.c.h.b16 %v106
    %v153 = vunpack.c.l.b16 %v107
    %v154 = vunpack.c.h.b16 %v107
    %v155 = vunpack.c.l.b16 %v108
    %v156 = vunpack.c.h.b16 %v108
    %v157 = vunpack.c.l.b16 %v109
    %v158 = vunpack.c.h.b16 %v109
    %v159 = vunpack.c.l.b16 %v110
    %v160 = vunpack.c.h.b16 %v110
    %v161 = vunpack.c.l.b16 %v111
    %v162 = vunpack.c.h.b16 %v111
    %v163 = vunpack.c.l.b16 %v112
    %v164 = vunpack.c.h.b16 %v112
    %v165 = vunpack.c.l.b16 %v113
    %v166 = vunpack.c.h.b16 %v113
    %v167 = vunpack.c.l.b16 %v114
    %v168 = vunpack.c.h.b16 %v114
    %v169 = vunpack.c.l.b16 %v115
    %v170 = vunpack.c.h.b16 %v115
    %v171 = vunpack.c.l.b16 %v116
    %v172 = vunpack.c.h.b16 %v116
    %v173 = vunpack.c.l.b16 %v117
    %v174 = vunpack.c.h.b16 %v117
    %v175 = vunpack.c.l.b16 %v118
    %v176 = vunpack.c.h.b16 %v118
    %v177 = vunpack.c.l.b16 %v119
    %v178 = vunpack.c.h.b16 %v119
    %v179 = vunpack.c.l.b16 %v120
    %v180 = vunpack.c.h.b16 %v120
    %v181 = vpack.c.b16 %v151, %v149
    %v182 = vpack.c.b16 %v152, %v150
    %v183 = vpack.c.b16 %v155, %v153
    %v184 = vpack.c.b16 %v156, %v154
    %v185 = vpack.c.b16 %v159, %v157
    %v186 = vpack.c.b16 %v160, %v158
    %v187 = vpack.c.b16 %v163, %v161
    %v188 = vpack.c.b16 %v164, %v162
    %v189 = vpack.c.b16 %v167, %v165
    %v190 = vpack.c.b16 %v168, %v166
    %v191 = vpack.c.b16 %v171, %v169
    %v192 = vpack.c.b16 %v172, %v170
    %v193 = vpack.c.b16 %v175, %v173
    %v194 = vpack.c.b16 %v176, %v174
    %v195 = vpack.c.b16 %v179, %v177
    %v196 = vpack.c.b16 %v180, %v178
    %213 = vmatpush.bf16.msra.mxu0 %v195
    %214 = vmatpush.bf16.msra.mxu0 %v193
    %215 = vmatpush.bf16.msra.mxu0 %v191
    %216 = vmatpush.bf16.msra.mxu0 %v189
    %217 = vmatpush.bf16.msra.mxu0 %v187
    %218 = vmatpush.bf16.msra.mxu0 %v185
    %219 = vmatpush.bf16.msra.mxu0 %v183
    %220 = vmatpush.bf16.msra.mxu0 %v181
    %221 = vmatmul.bf16.gmra.mxu0 %v131
    %v222 = vpop.f32.mrf.mxu0
    %v223 = vadd.f32 %v123, %v222
    %v224 = vpop.f32.mrf.mxu0
    %v225 = vadd.f32 %v123, %v224
    %226 = vdwg.mxu0
    %227 = vmatpush.bf16.msra.mxu0 %v196
    %228 = vmatpush.bf16.msra.mxu0 %v194
    %229 = vmatpush.bf16.msra.mxu0 %v192
    %230 = vmatpush.bf16.msra.mxu0 %v190
    %231 = vmatpush.bf16.msra.mxu0 %v188
    %232 = vmatpush.bf16.msra.mxu0 %v186
    %233 = vmatpush.bf16.msra.mxu0 %v184
    %234 = vmatpush.bf16.msra.mxu0 %v182
    %235 = vmatmul.bf16.gmra.mxu0 %v131
    %v236 = vpop.f32.mrf.mxu0
    %v237 = vadd.f32 %v124, %v236
    %v238 = vpop.f32.mrf.mxu0
    %v239 = vadd.f32 %v124, %v238
    %240 = vdwg.mxu0
    %v241 = vmax.f32 %v223, 0.0
    %v242 = vmax.f32 %v225, 0.0
    %v243 = vpack.c.bf16 %v242, %v241
    %v244 = vld [vmem:[#allocation8] sm:$0xf]
    %v245 = vld [vmem:[#allocation8 + $0x4] sm:$0xf]
    %v246 = vld [vmem:[#allocation8 + $0x8] sm:$0xf]
    %v247 = vld [vmem:[#allocation8 + $0xc] sm:$0xf]
    %v248 = vld [vmem:[#allocation8 + $0x10] sm:$0xf]
    %v249 = vld [vmem:[#allocation8 + $0x14] sm:$0xf]
    %v250 = vld [vmem:[#allocation8 + $0x18] sm:$0xf]
    %v251 = vld [vmem:[#allocation8 + $0x1c] sm:$0xf]
    %v252 = vld [vmem:[#allocation8 + $0x20] sm:$0xf]
    %v253 = vld [vmem:[#allocation8 + $0x24] sm:$0xf]
    %v254 = vld [vmem:[#allocation8 + $0x28] sm:$0xf]
    %v255 = vld [vmem:[#allocation8 + $0x2c] sm:$0xf]
    %v256 = vld [vmem:[#allocation8 + $0x30] sm:$0xf]
    %v257 = vld [vmem:[#allocation8 + $0x34] sm:$0xf]
    %v258 = vld [vmem:[#allocation8 + $0x38] sm:$0xf]
    %v259 = vld [vmem:[#allocation8 + $0x3c] sm:$0xf]
    %v260 = vld [vmem:[%s4] sm:$0x1]
    %v262 = vperm.slane %v260, 0
    %v280 = vunpack.c.l.b16 %v244
    %v281 = vunpack.c.l.b16 %v245
    %v282 = vunpack.c.l.b16 %v246
    %v283 = vunpack.c.l.b16 %v247
    %v284 = vunpack.c.l.b16 %v248
    %v285 = vunpack.c.l.b16 %v249
    %v286 = vunpack.c.l.b16 %v250
    %v287 = vunpack.c.l.b16 %v251
    %v288 = vunpack.c.l.b16 %v252
    %v289 = vunpack.c.l.b16 %v253
    %v290 = vunpack.c.l.b16 %v254
    %v291 = vunpack.c.l.b16 %v255
    %v292 = vunpack.c.l.b16 %v256
    %v293 = vunpack.c.l.b16 %v257
    %v294 = vunpack.c.l.b16 %v258
    %v295 = vunpack.c.l.b16 %v259
    %v296 = vpack.c.b16 %v281, %v280
    %v297 = vpack.c.b16 %v283, %v282
    %v298 = vpack.c.b16 %v285, %v284
    %v299 = vpack.c.b16 %v287, %v286
    %v300 = vpack.c.b16 %v289, %v288
    %v301 = vpack.c.b16 %v291, %v290
    %v302 = vpack.c.b16 %v293, %v292
    %v303 = vpack.c.b16 %v295, %v294
    %312 = vmatpush.bf16.msra.mxu0 %v303
    %313 = vmatpush.bf16.msra.mxu0 %v302
    %314 = vmatpush.bf16.msra.mxu0 %v301
    %315 = vmatpush.bf16.msra.mxu0 %v300
    %316 = vmatpush.bf16.msra.mxu0 %v299
    %317 = vmatpush.bf16.msra.mxu0 %v298
    %318 = vmatpush.bf16.msra.mxu0 %v297
    %319 = vmatpush.bf16.msra.mxu0 %v296
    %320 = vmatmul.bf16.gmra.mxu0 %v243
    %v321 = vpop.f32.mrf.mxu0
    %v322 = vadd.f32 %v262, %v321
    %v323 = vpop.f32.mrf.mxu0
    %v324 = vadd.f32 %v262, %v323
    %325 = vdwg.mxu0
    %v326 = vmax.f32 %v322, 0.0
    %v327 = vmax.f32 %v324, 0.0
    %v328 = vpack.c.bf16 %v327, %v326
    %v329 = vld [vmem:[#allocation10] sm:$0xf]
    %v330 = vld [vmem:[#allocation10 + $0x4] sm:$0xf]
    %v331 = vld [vmem:[#allocation10 + $0x8] sm:$0xf]
    %v332 = vld [vmem:[#allocation10 + $0xc] sm:$0xf]
    %v333 = vld [vmem:[#allocation10 + $0x10] sm:$0xf]
    %v334 = vld [vmem:[#allocation10 + $0x14] sm:$0xf]
    %v335 = vld [vmem:[#allocation10 + $0x18] sm:$0xf]
    %v336 = vld [vmem:[#allocation10 + $0x1c] sm:$0xf]
    %v337 = vld [vmem:[#allocation10 + $0x20] sm:$0xf]
    %v338 = vld [vmem:[#allocation10 + $0x24] sm:$0xf]
    %v339 = vld [vmem:[#allocation10 + $0x28] sm:$0xf]
    %v340 = vld [vmem:[#allocation10 + $0x2c] sm:$0xf]
    %v341 = vld [vmem:[#allocation10 + $0x30] sm:$0xf]
    %v342 = vld [vmem:[#allocation10 + $0x34] sm:$0xf]
    %v343 = vld [vmem:[#allocation10 + $0x38] sm:$0xf]
    %v344 = vld [vmem:[#allocation10 + $0x3c] sm:$0xf]
    %v345 = vld [vmem:[%s6] sm:$0x1]
    %v347 = vperm.slane %v345, 0
    %v365 = vunpack.c.l.b16 %v329
    %v366 = vunpack.c.l.b16 %v330
    %v367 = vunpack.c.l.b16 %v331
    %v368 = vunpack.c.l.b16 %v332
    %v369 = vunpack.c.l.b16 %v333
    %v370 = vunpack.c.l.b16 %v334
    %v371 = vunpack.c.l.b16 %v335
    %v372 = vunpack.c.l.b16 %v336
    %v373 = vunpack.c.l.b16 %v337
    %v374 = vunpack.c.l.b16 %v338
    %v375 = vunpack.c.l.b16 %v339
    %v376 = vunpack.c.l.b16 %v340
    %v377 = vunpack.c.l.b16 %v341
    %v378 = vunpack.c.l.b16 %v342
    %v379 = vunpack.c.l.b16 %v343
    %v380 = vunpack.c.l.b16 %v344
    %v381 = vpack.c.b16 %v366, %v365
    %v382 = vpack.c.b16 %v368, %v367
    %v383 = vpack.c.b16 %v370, %v369
    %v384 = vpack.c.b16 %v372, %v371
    %v385 = vpack.c.b16 %v374, %v373
    %v386 = vpack.c.b16 %v376, %v375
    %v387 = vpack.c.b16 %v378, %v377
    %v388 = vpack.c.b16 %v380, %v379
    %397 = vmatpush.bf16.msra.mxu0 %v388
    %398 = vmatpush.bf16.msra.mxu0 %v387
    %399 = vmatpush.bf16.msra.mxu0 %v386
    %400 = vmatpush.bf16.msra.mxu0 %v385
    %401 = vmatpush.bf16.msra.mxu0 %v384
    %402 = vmatpush.bf16.msra.mxu0 %v383
    %403 = vmatpush.bf16.msra.mxu0 %v382
    %404 = vmatpush.bf16.msra.mxu0 %v381
    %405 = vmatmul.bf16.gmra.mxu0 %v328
    %v406 = vpop.f32.mrf.mxu0
    %v407 = vadd.f32 %v347, %v406
    %v408 = vpop.f32.mrf.mxu0
    %v409 = vadd.f32 %v347, %v408
    %410 = vdwg.mxu0
    %v411 = vmax.f32 %v407, 0.0
    %v412 = vmax.f32 %v409, 0.0
    %v413 = vadd.f32 %v411, %v237
    %v414 = vadd.f32 %v412, %v239
    %415 = vst [vmem:[#allocation11] sm:$0xff] %v413
    %416 = vst [vmem:[#allocation11 + $0x8] sm:$0xff] %v414
    // Predicated region
    $region50: #{tpu_custom_call.1} parent=1 // pred_check
      _
    $region51: #{tpu_custom_call.1} parent=1 // pred_check_branch
      %418 = sbr.rel (0) target = $region53
    $region52: #{tpu_custom_call.1} parent=1 // pred_region
      %420 = vsyncadd [#allocation4], 0
      %s421 = sshll.u32 [#allocation11], 4
      %s422 = int_to_ptr.vmem [resolvable:$true] %s421
      %s423 = sshll.u32 %s7, 4
      %s424 = int_to_ptr.hbm [resolvable:$true] %s423
      %429 = dma.vmem_to_hbm [thread:$0]  %s422, 256, %s424, [#allocation4], 128, 128, 8
    $region53: #{tpu_custom_call.1} parent=1 // pred_fallthru
      _
    // Predicated region
    $region54: #{tpu_custom_call.1} parent=1 // pred_check
      _
    $region55: #{tpu_custom_call.1} parent=1 // pred_check_branch
      %431 = sbr.rel (0) target = $region57
    $region56: #{tpu_custom_call.1} parent=1 // pred_region
      %433 = dma.done [#allocation4], 256
    $region57: #{tpu_custom_call.1} parent=1 // pred_fallthru
      _
    %434 = vsyncpa [#allocation3], 1
    %435 = vsyncpa [#allocation6], 1
    %436 = vsyncpa [#allocation9], 1
    %437 = vsyncpa [#allocation4], 1

</llo_original>
